<compile_context>
chip_gen: v6e
topology: v6e:2x2x1
jax: 0.10.0
libtpu: 0.0.40
codegen_flags: <defaults>
</compile_context>

<pallas_src>
import jax
import jax.numpy as jnp
from jax.experimental import pallas as pl
from jax.experimental.pallas import tpu as pltpu


def _round_up(x, m):
    return (x + m - 1) // m * m


def _make_kernel(has_shortcut, compute_dtype):
    """Build the fused kernel for one tile of rows (static shortcut variant)."""

    def kernel(x_ref, w0_ref, b0_ref, w1_ref, b1_ref, *rest):
        if has_shortcut:
            ws_ref, wh_ref, bh_ref, out_ref = rest
        else:
            wh_ref, bh_ref, out_ref = rest

        x = x_ref[...]                                        # (tm, in_dim)

        # net = fc_0(relu(x))
        h = jnp.maximum(x, 0.0).astype(compute_dtype)
        net = jnp.dot(h, w0_ref[...],
                      preferred_element_type=jnp.float32) + b0_ref[...]

        # dx = fc_1(relu(net))
        dh = jnp.maximum(net, 0.0).astype(compute_dtype)
        dx = jnp.dot(dh, w1_ref[...],
                     preferred_element_type=jnp.float32) + b1_ref[...]

        # Shortcut: real (bias-free) linear only when in_dim != dim.
        if has_shortcut:
            x_s = jnp.dot(x.astype(compute_dtype), ws_ref[...],
                          preferred_element_type=jnp.float32)
        else:
            x_s = x.astype(jnp.float32)

        x_out = x_s + dx
        # leaky_relu(x_out, negative_slope=0.2)
        x_out = jnp.where(x_out > 0, x_out, 0.2 * x_out)

        # Fused heads: [fc_mean | fc_logstd], lane-padded to a multiple of 128
        # so the store below is lane-dense.
        heads = jnp.dot(x_out.astype(compute_dtype), wh_ref[...],
                        preferred_element_type=jnp.float32) + bh_ref[...]
        out_ref[...] = heads.astype(out_ref.dtype)

    return kernel


def latent_encoder_forward(x, params, *, tile_m=512, compute_dtype=jnp.float32):
    """x: [B, N, in_dim] -> (mean [B, N, out_dim], logstd [B, N, out_dim])."""
    B, N, in_dim = x.shape
    M = B * N
    dim = params["w0"].shape[1]
    out_dim = params["wm"].shape[1]
    has_shortcut = "ws" in params          # PyTorch: shortcut exists iff in_dim != dim
    out_dtype = x.dtype

    # Adaptive row tile: as large as requested (multiple of 8), but no bigger
    # than the (8-rounded) problem size. Pad M up to a multiple of the tile.
    tile_m = max(8, min(_round_up(tile_m, 8), _round_up(M, 8)))
    M_pad = _round_up(M, tile_m)

    x2 = x.reshape(M, in_dim)
    if M_pad != M:
        x2 = jnp.pad(x2, ((0, M_pad - M), (0, 0)))
    x2 = x2.astype(compute_dtype)

    # Fuse the two heads into one matmul and pad lanes to a multiple of 128
    # so the kernel's output slab is lane-dense.
    out_fused = 2 * out_dim
    out_pad = _round_up(out_fused, 128)
    wh = jnp.concatenate([params["wm"], params["wl"]], axis=1)
    bh = jnp.concatenate([params["bm"], params["bl"]], axis=1)
    if out_pad != out_fused:
        wh = jnp.pad(wh, ((0, 0), (0, out_pad - out_fused)))
        bh = jnp.pad(bh, ((0, 0), (0, out_pad - out_fused)))

    w0 = params["w0"].astype(compute_dtype)
    w1 = params["w1"].astype(compute_dtype)
    wh = wh.astype(compute_dtype)
    b0 = params["b0"].astype(jnp.float32)   # biases added to f32 accumulators
    b1 = params["b1"].astype(jnp.float32)
    bh = bh.astype(jnp.float32)

    def full(arr):
        return pl.BlockSpec(arr.shape, lambda i: (0, 0))

    inputs = [x2, w0, b0, w1, b1]
    in_specs = [
        pl.BlockSpec((tile_m, in_dim), lambda i: (i, 0)),   # x tile
        full(w0), full(b0), full(w1), full(b1),
    ]
    if has_shortcut:
        ws = params["ws"].astype(compute_dtype)
        inputs.append(ws)
        in_specs.append(full(ws))
    inputs += [wh, bh]
    in_specs += [full(wh), full(bh)]

    grid = (M_pad // tile_m,)
    out_specs = pl.BlockSpec((tile_m, out_pad), lambda i: (i, 0))
    out_shape = jax.ShapeDtypeStruct((M_pad, out_pad), out_dtype)

    # Advisory cost estimate (helps XLA schedule around this mem-bound call).
    weight_bytes = int(sum(int(a.size) * a.dtype.itemsize for a in inputs[1:]))
    flops = int(2 * M_pad * (in_dim * dim + dim * dim
                             + (in_dim * dim if has_shortcut else 0)
                             + dim * out_pad))
    bytes_accessed = int(M_pad * in_dim * jnp.dtype(compute_dtype).itemsize
                         + M_pad * out_pad * jnp.dtype(out_dtype).itemsize
                         + weight_bytes)

    # VMEM footprint: double-buffered x/out tiles + (double-buffered) weights.
    vmem_need = int(2 * (tile_m * in_dim * jnp.dtype(compute_dtype).itemsize
                         + tile_m * out_pad * jnp.dtype(out_dtype).itemsize)
                    + 2 * weight_bytes + (1 << 20))
    vmem_limit = None
    if vmem_need > 16 * 2**20:                   # exceeds smallest default scoped VMEM (v5e)
        vmem_limit = min(vmem_need, 64 * 2**20)  # stay within v7x's 64 MiB physical VMEM

    out = pl.pallas_call(
        _make_kernel(has_shortcut, compute_dtype),
        out_shape=out_shape,
        grid_spec=pltpu.PrefetchScalarGridSpec(
            num_scalar_prefetch=0,
            grid=grid,
            in_specs=in_specs,
            out_specs=out_specs,
        ),
        compiler_params=pltpu.CompilerParams(
            dimension_semantics=("parallel",),
            vmem_limit_bytes=vmem_limit,
        ),
        cost_estimate=pl.CostEstimate(
            flops=flops, transcendentals=0, bytes_accessed=bytes_accessed),
    )(*inputs)

    mean = out[:M, :out_dim].reshape(B, N, out_dim).astype(out_dtype)
    logstd = out[:M, out_dim:2 * out_dim].reshape(B, N, out_dim).astype(out_dtype)
    return mean, logstd


def init_params(key, in_dim, dim, out_dim, dtype=jnp.float32):
    """Deterministic synthetic parameters, already in [fan_in, fan_out] layout.

    PyTorch zero-initializes fc_1.weight; we use nonzero values here so the
    fc_1 matmul path is actually exercised by the correctness check (forward
    semantics are identical for any weight values).
    """
    ks = jax.random.split(key, 9)
    scale = 0.1

    def lin(k, fan_in, fan_out):
        return scale * jax.random.normal(k, (fan_in, fan_out), dtype)

    params = {
        "w0": lin(ks[0], in_dim, dim),
        "b0": scale * jax.random.normal(ks[1], (1, dim), dtype),
        "w1": lin(ks[2], dim, dim),
        "b1": scale * jax.random.normal(ks[3], (1, dim), dtype),
        "wm": lin(ks[4], dim, out_dim),
        "bm": scale * jax.random.normal(ks[5], (1, out_dim), dtype),
        "wl": lin(ks[6], dim, out_dim),
        "bl": scale * jax.random.normal(ks[7], (1, out_dim), dtype),
    }
    if in_dim != dim:
        params["ws"] = lin(ks[8], in_dim, dim)   # shortcut (bias-free)
    return params


def _reference_forward(x, p):
    """Pure-JAX reference mirroring the PyTorch semantics."""
    B, N, in_dim = x.shape
    x2 = x.reshape(B * N, in_dim).astype(jnp.float32)
    net = jnp.maximum(x2, 0.0) @ p["w0"] + p["b0"]
    dx = jnp.maximum(net, 0.0) @ p["w1"] + p["b1"]
    x_s = x2 @ p["ws"] if "ws" in p else x2
    x_out = x_s + dx
    x_out = jnp.where(x_out > 0, x_out, 0.2 * x_out)
    mean = x_out @ p["wm"] + p["bm"]
    logstd = x_out @ p["wl"] + p["bl"]
    return mean.reshape(B, N, -1), logstd.reshape(B, N, -1)


if __name__ == "__main__":
    B, N = 2, 8
    # Two configs: with a real shortcut linear (in_dim != dim) and with the
    # identity shortcut path (in_dim == dim, no shortcut layer in PyTorch).
    configs = [
        (8, 32, 16),
        (32, 32, 16),
    ]

    key = jax.random.PRNGKey(0)
    for idx, (in_dim, dim, out_dim) in enumerate(configs):
        kx, kp = jax.random.split(jax.random.fold_in(key, idx))
        x = jax.random.normal(kx, (B, N, in_dim), jnp.float32)
        params = init_params(kp, in_dim, dim, out_dim)

        mean, logstd = latent_encoder_forward(x, params, tile_m=512)
        jax.block_until_ready((mean, logstd))

        ref_mean, ref_logstd = _reference_forward(x, params)
        assert jnp.allclose(mean, ref_mean, atol=1e-4, rtol=1e-4), ("mean", idx)
        assert jnp.allclose(logstd, ref_logstd, atol=1e-4, rtol=1e-4), ("logstd", idx)

    print("KERNEL_OK")
</pallas_src>

<mosaic_0001>
module attributes {stable_mosaic.version = 11 : i64} {
  func.func @kernel(%arg0: i32, %arg1: memref<16x8xf32, #tpu.memory_space<vmem>>, %arg2: memref<8x32xf32, #tpu.memory_space<vmem>>, %arg3: memref<1x32xf32, #tpu.memory_space<vmem>>, %arg4: memref<32x32xf32, #tpu.memory_space<vmem>>, %arg5: memref<1x32xf32, #tpu.memory_space<vmem>>, %arg6: memref<8x32xf32, #tpu.memory_space<vmem>>, %arg7: memref<32x128xf32, #tpu.memory_space<vmem>>, %arg8: memref<1x128xf32, #tpu.memory_space<vmem>>, %arg9: memref<16x128xf32, #tpu.memory_space<vmem>>) attributes {dimension_semantics = [#tpu.dimension_semantics<parallel>], iteration_bounds = array<i64: 1>, scalar_prefetch = 0 : i64, scratch_operands = 0 : i64, tpu.core_type = #tpu.core_type<tc>, window_params = [{transform_indices = @transform_0, window_bounds = array<i64: 16, 8>}, {pipeline_mode = #tpu.pipeline_mode<synchronous>, transform_indices = @transform_1, window_bounds = array<i64: 8, 32>}, {pipeline_mode = #tpu.pipeline_mode<synchronous>, transform_indices = @transform_2, window_bounds = array<i64: 1, 32>}, {pipeline_mode = #tpu.pipeline_mode<synchronous>, transform_indices = @transform_3, window_bounds = array<i64: 32, 32>}, {pipeline_mode = #tpu.pipeline_mode<synchronous>, transform_indices = @transform_4, window_bounds = array<i64: 1, 32>}, {pipeline_mode = #tpu.pipeline_mode<synchronous>, transform_indices = @transform_5, window_bounds = array<i64: 8, 32>}, {pipeline_mode = #tpu.pipeline_mode<synchronous>, transform_indices = @transform_6, window_bounds = array<i64: 32, 128>}, {pipeline_mode = #tpu.pipeline_mode<synchronous>, transform_indices = @transform_7, window_bounds = array<i64: 1, 128>}, {transform_indices = @transform_8, window_bounds = array<i64: 16, 128>}]} {
    %c0 = arith.constant 0 : index
    %c0_0 = arith.constant 0 : index
    %0 = vector.load %arg1[%c0, %c0_0] : memref<16x8xf32, #tpu.memory_space<vmem>>, vector<16x8xf32>
    %cst = arith.constant 0.000000e+00 : f32
    %1 = vector.broadcast %cst : f32 to vector<16x8xf32>
    %2 = arith.maximumf %0, %1 : vector<16x8xf32>
    %c0_1 = arith.constant 0 : index
    %c0_2 = arith.constant 0 : index
    %3 = vector.load %arg2[%c0_1, %c0_2] : memref<8x32xf32, #tpu.memory_space<vmem>>, vector<8x32xf32>
    %cst_3 = arith.constant dense<0.000000e+00> : vector<16x32xf32>
    %4 = tpu.matmul %2, %3, %cst_3 {dimension_numbers = #tpu.dot_dimension_numbers<[1], [0], [0], [1], [0, 0, 1, 1], [], []>} : vector<16x8xf32>, vector<8x32xf32>, vector<16x32xf32> -> vector<16x32xf32>
    %c0_4 = arith.constant 0 : index
    %c0_5 = arith.constant 0 : index
    %5 = vector.load %arg3[%c0_4, %c0_5] : memref<1x32xf32, #tpu.memory_space<vmem>>, vector<1x32xf32>
    %6 = vector.broadcast %5 : vector<1x32xf32> to vector<16x32xf32>
    %7 = arith.addf %4, %6 : vector<16x32xf32>
    %cst_6 = arith.constant 0.000000e+00 : f32
    %8 = vector.broadcast %cst_6 : f32 to vector<16x32xf32>
    %9 = arith.maximumf %7, %8 : vector<16x32xf32>
    %c0_7 = arith.constant 0 : index
    %c0_8 = arith.constant 0 : index
    %10 = vector.load %arg4[%c0_7, %c0_8] : memref<32x32xf32, #tpu.memory_space<vmem>>, vector<32x32xf32>
    %cst_9 = arith.constant dense<0.000000e+00> : vector<16x32xf32>
    %11 = tpu.matmul %9, %10, %cst_9 {dimension_numbers = #tpu.dot_dimension_numbers<[1], [0], [0], [1], [0, 0, 1, 1], [], []>} : vector<16x32xf32>, vector<32x32xf32>, vector<16x32xf32> -> vector<16x32xf32>
    %c0_10 = arith.constant 0 : index
    %c0_11 = arith.constant 0 : index
    %12 = vector.load %arg5[%c0_10, %c0_11] : memref<1x32xf32, #tpu.memory_space<vmem>>, vector<1x32xf32>
    %13 = vector.broadcast %12 : vector<1x32xf32> to vector<16x32xf32>
    %14 = arith.addf %11, %13 : vector<16x32xf32>
    %c0_12 = arith.constant 0 : index
    %c0_13 = arith.constant 0 : index
    %15 = vector.load %arg6[%c0_12, %c0_13] : memref<8x32xf32, #tpu.memory_space<vmem>>, vector<8x32xf32>
    %cst_14 = arith.constant dense<0.000000e+00> : vector<16x32xf32>
    %16 = tpu.matmul %0, %15, %cst_14 {dimension_numbers = #tpu.dot_dimension_numbers<[1], [0], [0], [1], [0, 0, 1, 1], [], []>} : vector<16x8xf32>, vector<8x32xf32>, vector<16x32xf32> -> vector<16x32xf32>
    %17 = arith.addf %16, %14 : vector<16x32xf32>
    %cst_15 = arith.constant 0.000000e+00 : f32
    %18 = vector.broadcast %cst_15 : f32 to vector<16x32xf32>
    %19 = arith.cmpf ogt, %17, %18 : vector<16x32xf32>
    %cst_16 = arith.constant 2.000000e-01 : f32
    %20 = vector.broadcast %cst_16 : f32 to vector<16x32xf32>
    %21 = arith.mulf %20, %17 : vector<16x32xf32>
    %22 = arith.select %19, %17, %21 : vector<16x32xi1>, vector<16x32xf32>
    %c0_17 = arith.constant 0 : index
    %c0_18 = arith.constant 0 : index
    %23 = vector.load %arg7[%c0_17, %c0_18] : memref<32x128xf32, #tpu.memory_space<vmem>>, vector<32x128xf32>
    %cst_19 = arith.constant dense<0.000000e+00> : vector<16x128xf32>
    %24 = tpu.matmul %22, %23, %cst_19 {dimension_numbers = #tpu.dot_dimension_numbers<[1], [0], [0], [1], [0, 0, 1, 1], [], []>} : vector<16x32xf32>, vector<32x128xf32>, vector<16x128xf32> -> vector<16x128xf32>
    %c0_20 = arith.constant 0 : index
    %c0_21 = arith.constant 0 : index
    %25 = vector.load %arg8[%c0_20, %c0_21] : memref<1x128xf32, #tpu.memory_space<vmem>>, vector<1x128xf32>
    %26 = vector.broadcast %25 : vector<1x128xf32> to vector<16x128xf32>
    %27 = arith.addf %24, %26 : vector<16x128xf32>
    %c0_22 = arith.constant 0 : index
    %c0_23 = arith.constant 0 : index
    %28 = vector.load %arg9[%c0_22, %c0_23] : memref<16x128xf32, #tpu.memory_space<vmem>>, vector<16x128xf32>
    tpu.vector_store %arg9[%c0_22, %c0_23], %27 {strides = array<i32>} : memref<16x128xf32, #tpu.memory_space<vmem>>, vector<16x128xf32>,
    return
  }
  func.func @transform_0(%arg0: i32) -> (i32, i32) {
    %c0_i32 = arith.constant 0 : i32
    %c0_i32_0 = arith.constant 0 : i32
    return %arg0, %c0_i32 : i32, i32
  }
  func.func @transform_1(%arg0: i32) -> (i32, i32) {
    %c0_i32 = arith.constant 0 : i32
    %c0_i32_0 = arith.constant 0 : i32
    %c0_i32_1 = arith.constant 0 : i32
    return %c0_i32, %c0_i32_0 : i32, i32
  }
  func.func @transform_2(%arg0: i32) -> (i32, i32) {
    %c0_i32 = arith.constant 0 : i32
    %c0_i32_0 = arith.constant 0 : i32
    %c0_i32_1 = arith.constant 0 : i32
    return %c0_i32, %c0_i32_0 : i32, i32
  }
  func.func @transform_3(%arg0: i32) -> (i32, i32) {
    %c0_i32 = arith.constant 0 : i32
    %c0_i32_0 = arith.constant 0 : i32
    %c0_i32_1 = arith.constant 0 : i32
    return %c0_i32, %c0_i32_0 : i32, i32
  }
  func.func @transform_4(%arg0: i32) -> (i32, i32) {
    %c0_i32 = arith.constant 0 : i32
    %c0_i32_0 = arith.constant 0 : i32
    %c0_i32_1 = arith.constant 0 : i32
    return %c0_i32, %c0_i32_0 : i32, i32
  }
  func.func @transform_5(%arg0: i32) -> (i32, i32) {
    %c0_i32 = arith.constant 0 : i32
    %c0_i32_0 = arith.constant 0 : i32
    %c0_i32_1 = arith.constant 0 : i32
    return %c0_i32, %c0_i32_0 : i32, i32
  }
  func.func @transform_6(%arg0: i32) -> (i32, i32) {
    %c0_i32 = arith.constant 0 : i32
    %c0_i32_0 = arith.constant 0 : i32
    %c0_i32_1 = arith.constant 0 : i32
    return %c0_i32, %c0_i32_0 : i32, i32
  }
  func.func @transform_7(%arg0: i32) -> (i32, i32) {
    %c0_i32 = arith.constant 0 : i32
    %c0_i32_0 = arith.constant 0 : i32
    %c0_i32_1 = arith.constant 0 : i32
    return %c0_i32, %c0_i32_0 : i32, i32
  }
  func.func @transform_8(%arg0: i32) -> (i32, i32) {
    %c0_i32 = arith.constant 0 : i32
    %c0_i32_0 = arith.constant 0 : i32
    return %arg0, %c0_i32 : i32, i32
  }
}

</mosaic_0001>

<llo_original>
// kernel: tpu_custom_call.1
$region0: #{tpu_custom_call.1}
  #allocation0 [shape = 'u32[]', space=smem, size = 0x4, offset = 0x4, fixed_abs, tag = 'smem constant byte address 0x4 - core index']
  #allocation1 [shape = 'u32[144,128]{1,0:T(1,128)}', space=vmem, size = 0x12000, scoped, tag = 'internal scratch']
  %s0 = inlined_call_operand.vmem [shape: f32[16,8], index: 0, kind: input, shape index: {}]
  %s1 = inlined_call_operand.hbm [shape: f32[8,32], index: 1, kind: input, shape index: {}]
  %s2 = inlined_call_operand.vmem [shape: f32[1,32], index: 2, kind: input, shape index: {}]
  %s3 = inlined_call_operand.hbm [shape: f32[32,32], index: 3, kind: input, shape index: {}]
  %s4 = inlined_call_operand.vmem [shape: f32[1,32], index: 4, kind: input, shape index: {}]
  %s5 = inlined_call_operand.hbm [shape: f32[8,32], index: 5, kind: input, shape index: {}]
  %s6 = inlined_call_operand.vmem [shape: f32[32,128], index: 6, kind: input, shape index: {}]
  %s7 = inlined_call_operand.vmem [shape: f32[1,128], index: 7, kind: input, shape index: {}]
  %s8 = inlined_call_operand.hbm [shape: f32[16,128], index: 8, kind: output, shape index: {}]
  %s9 = sld [smem:[#allocation0]]
  $region54: #{tpu_custom_call.1} parent=0
    _
  %s11 = ssub.s32 1, %s9
  %s12 = scalar_select 0, %s11, %s9
  $region1: #{tpu_custom_call.1} parent=0
    #allocation2 [shape = 'u8[4096]{0}', space=vmem, size = 0x1000, scoped, tag = 'input window, operand 1, single buffered']
    #allocation3 [shape = 's32[1]{0}', space=sflag, size = 0x4, scoped, tag = 'scoped memory for tpu_custom_call.1']
    #allocation4 [shape = 's32[1]{0}', space=sflag, size = 0x4, scoped, tag = 'scoped memory for tpu_custom_call.1']
    #allocation5 [shape = 'u8[16384]{0}', space=vmem, size = 0x4000, scoped, tag = 'input window, operand 3, single buffered']
    #allocation6 [shape = 's32[1]{0}', space=sflag, size = 0x4, scoped, tag = 'scoped memory for tpu_custom_call.1']
    #allocation7 [shape = 'u8[4096]{0}', space=vmem, size = 0x1000, scoped, tag = 'input window, operand 5, single buffered']
    #allocation8 [shape = 'u8[8192]{0}', space=vmem, size = 0x2000, scoped, tag = 'output window, operand 0, single buffered']
    %13 = vsyncpa [#allocation3], 0
    %14 = vsyncpa [#allocation6], 0
    %15 = vsyncpa [#allocation4], 0
    // Predicated region
    $region2: #{tpu_custom_call.1} parent=1 // pred_check
      _
    $region3: #{tpu_custom_call.1} parent=1 // pred_check_branch
      %17 = sbr.rel (0) target = $region5
    $region4: #{tpu_custom_call.1} parent=1 // pred_region
      _
    $region5: #{tpu_custom_call.1} parent=1 // pred_fallthru
      _
    // Predicated region
    $region6: #{tpu_custom_call.1} parent=1 // pred_check
      _
    $region7: #{tpu_custom_call.1} parent=1 // pred_check_branch
      %19 = sbr.rel (0) target = $region9
    $region8: #{tpu_custom_call.1} parent=1 // pred_region
      %s21 = ssub.s32 128, 128
      %22 = vsyncadd [#allocation3], %s21
      %s24 = sshll.u32 [#allocation2], 4
      %s25 = int_to_ptr.vmem [resolvable:$true] %s24
      %27 = dma.hbm_to_vmem [thread:$0]  %s1, 128, %s25, [#allocation3]
    $region9: #{tpu_custom_call.1} parent=1 // pred_fallthru
      _
    // Predicated region
    $region10: #{tpu_custom_call.1} parent=1 // pred_check
      _
    $region11: #{tpu_custom_call.1} parent=1 // pred_check_branch
      %29 = sbr.rel (0) target = $region13
    $region12: #{tpu_custom_call.1} parent=1 // pred_region
      _
    $region13: #{tpu_custom_call.1} parent=1 // pred_fallthru
      _
    // Predicated region
    $region14: #{tpu_custom_call.1} parent=1 // pred_check
      _
    $region15: #{tpu_custom_call.1} parent=1 // pred_check_branch
      %31 = sbr.rel (0) target = $region17
    $region16: #{tpu_custom_call.1} parent=1 // pred_region
      %s33 = ssub.s32 512, 512
      %34 = vsyncadd [#allocation6], %s33
      %s35 = sshll.u32 [#allocation5], 4
      %s36 = int_to_ptr.vmem [resolvable:$true] %s35
      %41 = dma.hbm_to_vmem [thread:$0]  %s3, 512, %s36, [#allocation6], 128, 128, 8
    $region17: #{tpu_custom_call.1} parent=1 // pred_fallthru
      _
    // Predicated region
    $region18: #{tpu_custom_call.1} parent=1 // pred_check
      _
    $region19: #{tpu_custom_call.1} parent=1 // pred_check_branch
      %43 = sbr.rel (0) target = $region21
    $region20: #{tpu_custom_call.1} parent=1 // pred_region
      _
    $region21: #{tpu_custom_call.1} parent=1 // pred_fallthru
      _
    // Predicated region
    $region22: #{tpu_custom_call.1} parent=1 // pred_check
      _
    $region23: #{tpu_custom_call.1} parent=1 // pred_check_branch
      %45 = sbr.rel (0) target = $region25
    $region24: #{tpu_custom_call.1} parent=1 // pred_region
      %s47 = ssub.s32 128, 128
      %48 = vsyncadd [#allocation6], %s47
      %s50 = sshll.u32 [#allocation7], 4
      %s51 = int_to_ptr.vmem [resolvable:$true] %s50
      %53 = dma.hbm_to_vmem [thread:$0]  %s5, 128, %s51, [#allocation6]
    $region25: #{tpu_custom_call.1} parent=1 // pred_fallthru
      _
    // Predicated region
    $region26: #{tpu_custom_call.1} parent=1 // pred_check
      _
    $region27: #{tpu_custom_call.1} parent=1 // pred_check_branch
      %55 = sbr.rel (0) target = $region29
    $region28: #{tpu_custom_call.1} parent=1 // pred_region
      _
    $region29: #{tpu_custom_call.1} parent=1 // pred_fallthru
      _
    // Predicated region
    $region30: #{tpu_custom_call.1} parent=1 // pred_check
      _
    $region31: #{tpu_custom_call.1} parent=1 // pred_check_branch
      %57 = sbr.rel (0) target = $region33
    $region32: #{tpu_custom_call.1} parent=1 // pred_region
      _
    $region33: #{tpu_custom_call.1} parent=1 // pred_fallthru
      _
    // Predicated region
    $region34: #{tpu_custom_call.1} parent=1 // pred_check
      _
    $region35: #{tpu_custom_call.1} parent=1 // pred_check_branch
      %59 = sbr.rel (0) target = $region37
    $region36: #{tpu_custom_call.1} parent=1 // pred_region
      %60 = dma.done [#allocation3], 128
    $region37: #{tpu_custom_call.1} parent=1 // pred_fallthru
      _
    // Predicated region
    $region38: #{tpu_custom_call.1} parent=1 // pred_check
      _
    $region39: #{tpu_custom_call.1} parent=1 // pred_check_branch
      %62 = sbr.rel (0) target = $region41
    $region40: #{tpu_custom_call.1} parent=1 // pred_region
      %63 = dma.done [#allocation6], 512
    $region41: #{tpu_custom_call.1} parent=1 // pred_fallthru
      _
    // Predicated region
    $region42: #{tpu_custom_call.1} parent=1 // pred_check
      _
    $region43: #{tpu_custom_call.1} parent=1 // pred_check_branch
      %65 = sbr.rel (0) target = $region45
    $region44: #{tpu_custom_call.1} parent=1 // pred_region
      %66 = dma.done [#allocation6], 128
    $region45: #{tpu_custom_call.1} parent=1 // pred_fallthru
      _
    %v67 = vld [vmem:[%s0] sm:$0xff]
    %v68 = vld [vmem:[%s0 + $0x8] sm:$0xff]
    %v69 = vmax.f32 %v67, 0.0
    %v70 = vmax.f32 %v68, 0.0
    %v71 = vld [vmem:[#allocation2] sm:$0xff]
    %v72 = vld [vmem:[%s2] sm:$0x1]
    %v74 = vlaneseq
    %v75 = vshrl.u32 %v74, 7
    %v76 = vsub.s32 0, %v75
    %v77 = vrot.slane %v72, %v76
    %vm79 = vcmask 64512
    %v81 = vsel %vm79, %v69, 0
    %v84 = vsel %vm79, %v70, 0
    %86 = vmatprep.subr.mxu0 0.0
    %87 = vmatpush1.msra.mxu0 0.0
    %88 = vmatprep.subr.mxu0 0.0
    %89 = vmatpush1.msra.mxu0 0.0
    %90 = vmatprep.subr.mxu0 0.0
    %91 = vmatpush1.msra.mxu0 0.0
    %92 = vmatprep.subr.mxu0 0.0
    %93 = vmatpush1.msra.mxu0 0.0
    %94 = vmatprep.subr.mxu0 0.0
    %95 = vmatpush1.msra.mxu0 0.0
    %96 = vmatprep.subr.mxu0 0.0
    %97 = vmatpush1.msra.mxu0 0.0
    %98 = vmatprep.subr.mxu0 0.0
    %99 = vmatpush1.msra.mxu0 0.0
    %100 = vmatprep.subr.mxu0 0.0
    %101 = vmatpush1.msra.mxu0 0.0
    %102 = vmatprep.subr.mxu0 0.0
    %103 = vmatpush1.msra.mxu0 0.0
    %104 = vmatprep.subr.mxu0 0.0
    %105 = vmatpush1.msra.mxu0 0.0
    %106 = vmatprep.subr.mxu0 0.0
    %107 = vmatpush1.msra.mxu0 0.0
    %108 = vmatprep.subr.mxu0 0.0
    %109 = vmatpush1.msra.mxu0 0.0
    %110 = vmatprep.subr.mxu0 0.0
    %111 = vmatpush1.msra.mxu0 0.0
    %112 = vmatprep.subr.mxu0 0.0
    %113 = vmatpush1.msra.mxu0 0.0
    %114 = vmatprep.subr.mxu0 0.0
    %115 = vmatpush1.msra.mxu0 0.0
    %116 = vmatprep.subr.mxu0 0.0
    %117 = vmatpush1.msra.mxu0 %v71
    %118 = vmatprep.subr.mxu0 0.0
    %119 = vmatpush2.msra.mxu0 0.0
    %120 = vmatprep.subr.mxu0 0.0
    %121 = vmatpush2.msra.mxu0 0.0
    %122 = vmatprep.subr.mxu0 0.0
    %123 = vmatpush2.msra.mxu0 0.0
    %124 = vmatprep.subr.mxu0 0.0
    %125 = vmatpush2.msra.mxu0 0.0
    %126 = vmatprep.subr.mxu0 0.0
    %127 = vmatpush2.msra.mxu0 0.0
    %128 = vmatprep.subr.mxu0 0.0
    %129 = vmatpush2.msra.mxu0 0.0
    %130 = vmatprep.subr.mxu0 0.0
    %131 = vmatpush2.msra.mxu0 0.0
    %132 = vmatprep.subr.mxu0 0.0
    %133 = vmatpush2.msra.mxu0 0.0
    %134 = vmatprep.subr.mxu0 0.0
    %135 = vmatpush2.msra.mxu0 0.0
    %136 = vmatprep.subr.mxu0 0.0
    %137 = vmatpush2.msra.mxu0 0.0
    %138 = vmatprep.subr.mxu0 0.0
    %139 = vmatpush2.msra.mxu0 0.0
    %140 = vmatprep.subr.mxu0 0.0
    %141 = vmatpush2.msra.mxu0 0.0
    %142 = vmatprep.subr.mxu0 0.0
    %143 = vmatpush2.msra.mxu0 0.0
    %144 = vmatprep.subr.mxu0 0.0
    %145 = vmatpush2.msra.mxu0 0.0
    %146 = vmatprep.subr.mxu0 0.0
    %147 = vmatpush2.msra.mxu0 0.0
    %148 = vmatprep.subr.mxu0 0.0
    %149 = vmatpush2.msra.mxu0 0.0
    %150 = vmatprep.mubr.f32.mxu0 0.0
    %151 = vmatmul.mubr.f32.gmra.mxu0 %v81
    %v152 = vpop.f32.mrf.mxu0
    %v153 = vadd.f32 %v77, %v152
    %v154 = vpop.f32.mrf.mxu0
    %155 = vmatprep.mubr.f32.mxu0 0.0
    %156 = vmatmul.mubr.f32.gmra.mxu0 %v84
    %v157 = vpop.f32.mrf.mxu0
    %v158 = vadd.f32 %v77, %v157
    %v159 = vpop.f32.mrf.mxu0
    %160 = vdwg.mxu0
    %v161 = vmax.f32 %v153, 0.0
    %v162 = vmax.f32 %v158, 0.0
    %v163 = vld [vmem:[#allocation5] sm:$0xff]
    %v164 = vld [vmem:[#allocation5 + $0x8] sm:$0xff]
    %v165 = vld [vmem:[#allocation5 + $0x10] sm:$0xff]
    %v166 = vld [vmem:[#allocation5 + $0x18] sm:$0xff]
    %v167 = vld [vmem:[%s4] sm:$0x1]
    %v169 = vlaneseq
    %v170 = vshrl.u32 %v169, 7
    %v171 = vsub.s32 0, %v170
    %v172 = vrot.slane %v167, %v171
    %vm174 = vcmask 261120
    %v176 = vsel %vm174, %v161, 0
    %v179 = vsel %vm174, %v162, 0
    %181 = vmatprep.subr.mxu0 0.0
    %182 = vmatpush1.msra.mxu0 0.0
    %183 = vmatprep.subr.mxu0 0.0
    %184 = vmatpush1.msra.mxu0 0.0
    %185 = vmatprep.subr.mxu0 0.0
    %186 = vmatpush1.msra.mxu0 0.0
    %187 = vmatprep.subr.mxu0 0.0
    %188 = vmatpush1.msra.mxu0 0.0
    %189 = vmatprep.subr.mxu0 0.0
    %190 = vmatpush1.msra.mxu0 0.0
    %191 = vmatprep.subr.mxu0 0.0
    %192 = vmatpush1.msra.mxu0 0.0
    %193 = vmatprep.subr.mxu0 0.0
    %194 = vmatpush1.msra.mxu0 0.0
    %195 = vmatprep.subr.mxu0 0.0
    %196 = vmatpush1.msra.mxu0 0.0
    %197 = vmatprep.subr.mxu0 0.0
    %198 = vmatpush1.msra.mxu0 0.0
    %199 = vmatprep.subr.mxu0 0.0
    %200 = vmatpush1.msra.mxu0 0.0
    %201 = vmatprep.subr.mxu0 0.0
    %202 = vmatpush1.msra.mxu0 0.0
    %203 = vmatprep.subr.mxu0 0.0
    %204 = vmatpush1.msra.mxu0 0.0
    %205 = vmatprep.subr.mxu0 0.0
    %206 = vmatpush1.msra.mxu0 %v166
    %207 = vmatprep.subr.mxu0 0.0
    %208 = vmatpush1.msra.mxu0 %v165
    %209 = vmatprep.subr.mxu0 0.0
    %210 = vmatpush1.msra.mxu0 %v164
    %211 = vmatprep.subr.mxu0 0.0
    %212 = vmatpush1.msra.mxu0 %v163
    %213 = vmatprep.subr.mxu0 0.0
    %214 = vmatpush2.msra.mxu0 0.0
    %215 = vmatprep.subr.mxu0 0.0
    %216 = vmatpush2.msra.mxu0 0.0
    %217 = vmatprep.subr.mxu0 0.0
    %218 = vmatpush2.msra.mxu0 0.0
    %219 = vmatprep.subr.mxu0 0.0
    %220 = vmatpush2.msra.mxu0 0.0
    %221 = vmatprep.subr.mxu0 0.0
    %222 = vmatpush2.msra.mxu0 0.0
    %223 = vmatprep.subr.mxu0 0.0
    %224 = vmatpush2.msra.mxu0 0.0
    %225 = vmatprep.subr.mxu0 0.0
    %226 = vmatpush2.msra.mxu0 0.0
    %227 = vmatprep.subr.mxu0 0.0
    %228 = vmatpush2.msra.mxu0 0.0
    %229 = vmatprep.subr.mxu0 0.0
    %230 = vmatpush2.msra.mxu0 0.0
    %231 = vmatprep.subr.mxu0 0.0
    %232 = vmatpush2.msra.mxu0 0.0
    %233 = vmatprep.subr.mxu0 0.0
    %234 = vmatpush2.msra.mxu0 0.0
    %235 = vmatprep.subr.mxu0 0.0
    %236 = vmatpush2.msra.mxu0 0.0
    %237 = vmatprep.subr.mxu0 0.0
    %238 = vmatpush2.msra.mxu0 0.0
    %239 = vmatprep.subr.mxu0 0.0
    %240 = vmatpush2.msra.mxu0 0.0
    %241 = vmatprep.subr.mxu0 0.0
    %242 = vmatpush2.msra.mxu0 0.0
    %243 = vmatprep.subr.mxu0 0.0
    %244 = vmatpush2.msra.mxu0 0.0
    %245 = vmatprep.mubr.f32.mxu0 0.0
    %246 = vmatmul.mubr.f32.gmra.mxu0 %v176
    %v247 = vpop.f32.mrf.mxu0
    %v248 = vadd.f32 %v172, %v247
    %v249 = vpop.f32.mrf.mxu0
    %250 = vmatprep.mubr.f32.mxu0 0.0
    %251 = vmatmul.mubr.f32.gmra.mxu0 %v179
    %v252 = vpop.f32.mrf.mxu0
    %v253 = vadd.f32 %v172, %v252
    %v254 = vpop.f32.mrf.mxu0
    %255 = vdwg.mxu0
    %v256 = vld [vmem:[#allocation7] sm:$0xff]
    %v258 = vsel %vm79, %v67, 0
    %v261 = vsel %vm79, %v68, 0
    %263 = vmatprep.subr.mxu0 0.0
    %264 = vmatpush1.msra.mxu0 0.0
    %265 = vmatprep.subr.mxu0 0.0
    %266 = vmatpush1.msra.mxu0 0.0
    %267 = vmatprep.subr.mxu0 0.0
    %268 = vmatpush1.msra.mxu0 0.0
    %269 = vmatprep.subr.mxu0 0.0
    %270 = vmatpush1.msra.mxu0 0.0
    %271 = vmatprep.subr.mxu0 0.0
    %272 = vmatpush1.msra.mxu0 0.0
    %273 = vmatprep.subr.mxu0 0.0
    %274 = vmatpush1.msra.mxu0 0.0
    %275 = vmatprep.subr.mxu0 0.0
    %276 = vmatpush1.msra.mxu0 0.0
    %277 = vmatprep.subr.mxu0 0.0
    %278 = vmatpush1.msra.mxu0 0.0
    %279 = vmatprep.subr.mxu0 0.0
    %280 = vmatpush1.msra.mxu0 0.0
    %281 = vmatprep.subr.mxu0 0.0
    %282 = vmatpush1.msra.mxu0 0.0
    %283 = vmatprep.subr.mxu0 0.0
    %284 = vmatpush1.msra.mxu0 0.0
    %285 = vmatprep.subr.mxu0 0.0
    %286 = vmatpush1.msra.mxu0 0.0
    %287 = vmatprep.subr.mxu0 0.0
    %288 = vmatpush1.msra.mxu0 0.0
    %289 = vmatprep.subr.mxu0 0.0
    %290 = vmatpush1.msra.mxu0 0.0
    %291 = vmatprep.subr.mxu0 0.0
    %292 = vmatpush1.msra.mxu0 0.0
    %293 = vmatprep.subr.mxu0 0.0
    %294 = vmatpush1.msra.mxu0 %v256
    %295 = vmatprep.subr.mxu0 0.0
    %296 = vmatpush2.msra.mxu0 0.0
    %297 = vmatprep.subr.mxu0 0.0
    %298 = vmatpush2.msra.mxu0 0.0
    %299 = vmatprep.subr.mxu0 0.0
    %300 = vmatpush2.msra.mxu0 0.0
    %301 = vmatprep.subr.mxu0 0.0
    %302 = vmatpush2.msra.mxu0 0.0
    %303 = vmatprep.subr.mxu0 0.0
    %304 = vmatpush2.msra.mxu0 0.0
    %305 = vmatprep.subr.mxu0 0.0
    %306 = vmatpush2.msra.mxu0 0.0
    %307 = vmatprep.subr.mxu0 0.0
    %308 = vmatpush2.msra.mxu0 0.0
    %309 = vmatprep.subr.mxu0 0.0
    %310 = vmatpush2.msra.mxu0 0.0
    %311 = vmatprep.subr.mxu0 0.0
    %312 = vmatpush2.msra.mxu0 0.0
    %313 = vmatprep.subr.mxu0 0.0
    %314 = vmatpush2.msra.mxu0 0.0
    %315 = vmatprep.subr.mxu0 0.0
    %316 = vmatpush2.msra.mxu0 0.0
    %317 = vmatprep.subr.mxu0 0.0
    %318 = vmatpush2.msra.mxu0 0.0
    %319 = vmatprep.subr.mxu0 0.0
    %320 = vmatpush2.msra.mxu0 0.0
    %321 = vmatprep.subr.mxu0 0.0
    %322 = vmatpush2.msra.mxu0 0.0
    %323 = vmatprep.subr.mxu0 0.0
    %324 = vmatpush2.msra.mxu0 0.0
    %325 = vmatprep.subr.mxu0 0.0
    %326 = vmatpush2.msra.mxu0 0.0
    %327 = vmatprep.mubr.f32.mxu0 0.0
    %328 = vmatmul.mubr.f32.gmra.mxu0 %v258
    %v329 = vpop.f32.mrf.mxu0
    %v330 = vadd.f32 %v248, %v329
    %v331 = vpop.f32.mrf.mxu0
    %332 = vmatprep.mubr.f32.mxu0 0.0
    %333 = vmatmul.mubr.f32.gmra.mxu0 %v261
    %v334 = vpop.f32.mrf.mxu0
    %v335 = vadd.f32 %v253, %v334
    %v336 = vpop.f32.mrf.mxu0
    %337 = vdwg.mxu0
    %vm338 = vcmp.gt.f32.partialorder %v330, 0.0
    %vm339 = vcmp.gt.f32.partialorder %v335, 0.0
    %v340 = vmul.f32 %v330, 0.2
    %v341 = vmul.f32 %v335, 0.2
    %v342 = vsel %vm338, %v330, %v340
    %v343 = vsel %vm339, %v335, %v341
    %v344 = vld [vmem:[%s6] sm:$0xff]
    %v345 = vld [vmem:[%s6 + $0x8] sm:$0xff]
    %v346 = vld [vmem:[%s6 + $0x10] sm:$0xff]
    %v347 = vld [vmem:[%s6 + $0x18] sm:$0xff]
    %v348 = vld [vmem:[%s7] sm:$0x1]
    %v350 = vlaneseq
    %v351 = vshrl.u32 %v350, 7
    %v352 = vsub.s32 0, %v351
    %v353 = vrot.slane %v348, %v352
    %v356 = vsel %vm174, %v342, 0
    %v359 = vsel %vm174, %v343, 0
    %361 = vmatprep.subr.mxu0 0.0
    %362 = vmatpush1.msra.mxu0 0.0
    %363 = vmatprep.subr.mxu0 0.0
    %364 = vmatpush1.msra.mxu0 0.0
    %365 = vmatprep.subr.mxu0 0.0
    %366 = vmatpush1.msra.mxu0 0.0
    %367 = vmatprep.subr.mxu0 0.0
    %368 = vmatpush1.msra.mxu0 0.0
    %369 = vmatprep.subr.mxu0 0.0
    %370 = vmatpush1.msra.mxu0 0.0
    %371 = vmatprep.subr.mxu0 0.0
    %372 = vmatpush1.msra.mxu0 0.0
    %373 = vmatprep.subr.mxu0 0.0
    %374 = vmatpush1.msra.mxu0 0.0
    %375 = vmatprep.subr.mxu0 0.0
    %376 = vmatpush1.msra.mxu0 0.0
    %377 = vmatprep.subr.mxu0 0.0
    %378 = vmatpush1.msra.mxu0 0.0
    %379 = vmatprep.subr.mxu0 0.0
    %380 = vmatpush1.msra.mxu0 0.0
    %381 = vmatprep.subr.mxu0 0.0
    %382 = vmatpush1.msra.mxu0 0.0
    %383 = vmatprep.subr.mxu0 0.0
    %384 = vmatpush1.msra.mxu0 0.0
    %385 = vmatprep.subr.mxu0 0.0
    %386 = vmatpush1.msra.mxu0 %v347
    %387 = vmatprep.subr.mxu0 0.0
    %388 = vmatpush1.msra.mxu0 %v346
    %389 = vmatprep.subr.mxu0 0.0
    %390 = vmatpush1.msra.mxu0 %v345
    %391 = vmatprep.subr.mxu0 0.0
    %392 = vmatpush1.msra.mxu0 %v344
    %393 = vmatprep.subr.mxu0 0.0
    %394 = vmatpush2.msra.mxu0 0.0
    %395 = vmatprep.subr.mxu0 0.0
    %396 = vmatpush2.msra.mxu0 0.0
    %397 = vmatprep.subr.mxu0 0.0
    %398 = vmatpush2.msra.mxu0 0.0
    %399 = vmatprep.subr.mxu0 0.0
    %400 = vmatpush2.msra.mxu0 0.0
    %401 = vmatprep.subr.mxu0 0.0
    %402 = vmatpush2.msra.mxu0 0.0
    %403 = vmatprep.subr.mxu0 0.0
    %404 = vmatpush2.msra.mxu0 0.0
    %405 = vmatprep.subr.mxu0 0.0
    %406 = vmatpush2.msra.mxu0 0.0
    %407 = vmatprep.subr.mxu0 0.0
    %408 = vmatpush2.msra.mxu0 0.0
    %409 = vmatprep.subr.mxu0 0.0
    %410 = vmatpush2.msra.mxu0 0.0
    %411 = vmatprep.subr.mxu0 0.0
    %412 = vmatpush2.msra.mxu0 0.0
    %413 = vmatprep.subr.mxu0 0.0
    %414 = vmatpush2.msra.mxu0 0.0
    %415 = vmatprep.subr.mxu0 0.0
    %416 = vmatpush2.msra.mxu0 0.0
    %417 = vmatprep.subr.mxu0 0.0
    %418 = vmatpush2.msra.mxu0 0.0
    %419 = vmatprep.subr.mxu0 0.0
    %420 = vmatpush2.msra.mxu0 0.0
    %421 = vmatprep.subr.mxu0 0.0
    %422 = vmatpush2.msra.mxu0 0.0
    %423 = vmatprep.subr.mxu0 0.0
    %424 = vmatpush2.msra.mxu0 0.0
    %425 = vmatprep.mubr.f32.mxu0 0.0
    %426 = vmatmul.mubr.f32.gmra.mxu0 %v356
    %v427 = vpop.f32.mrf.mxu0
    %v428 = vadd.f32 %v353, %v427
    %v429 = vpop.f32.mrf.mxu0
    %430 = vmatprep.mubr.f32.mxu0 0.0
    %431 = vmatmul.mubr.f32.gmra.mxu0 %v359
    %v432 = vpop.f32.mrf.mxu0
    %v433 = vadd.f32 %v353, %v432
    %v434 = vpop.f32.mrf.mxu0
    %435 = vdwg.mxu0
    %436 = vst [vmem:[#allocation8] sm:$0xff] %v428
    %437 = vst [vmem:[#allocation8 + $0x8] sm:$0xff] %v433
    // Predicated region
    $region46: #{tpu_custom_call.1} parent=1 // pred_check
      _
    $region47: #{tpu_custom_call.1} parent=1 // pred_check_branch
      %439 = sbr.rel (0) target = $region49
    $region48: #{tpu_custom_call.1} parent=1 // pred_region
      %s441 = ssub.s32 256, 256
      %442 = vsyncadd [#allocation4], %s441
      %s443 = sshll.u32 [#allocation8], 4
      %s444 = int_to_ptr.vmem [resolvable:$true] %s443
      %449 = dma.vmem_to_hbm [thread:$0]  %s444, 256, %s8, [#allocation4], 128, 128, 8
    $region49: #{tpu_custom_call.1} parent=1 // pred_fallthru
      _
    // Predicated region
    $region50: #{tpu_custom_call.1} parent=1 // pred_check
      _
    $region51: #{tpu_custom_call.1} parent=1 // pred_check_branch
      %451 = sbr.rel (0) target = $region53
    $region52: #{tpu_custom_call.1} parent=1 // pred_region
      %452 = dma.done [#allocation4], 256
    $region53: #{tpu_custom_call.1} parent=1 // pred_fallthru
      _
    %453 = vsyncpa [#allocation3], 1
    %454 = vsyncpa [#allocation6], 1
    %455 = vsyncpa [#allocation4], 1

</llo_original>
